<compile_context>
chip_gen: v7x
topology: tpu7x:2x2x1
jax: 0.10.0
libtpu: 0.0.40
codegen_flags: <defaults>
</compile_context>

<pallas_src>
import functools

import jax
import jax.numpy as jnp
from jax.experimental import pallas as pl
from jax.experimental.pallas import tpu as pltpu

LANE = 128                       # TPU vreg lane width
VMEM_LIMIT = 32 * 1024 * 1024    # explicit scoped-VMEM limit (safe on v5e/v6e/v7x)
VMEM_BUDGET = 24 * 1024 * 1024   # target per-step footprint (headroom under the limit)


def chebynet_kernel(x_ref, l_ref, w_ref, o_ref, *, cheb_k, batch_tile, c_in):
    """One grid step: full Chebyshev stack for `batch_tile` batch elements.

    x_ref: (N, Bt*Cin)       dot-dtype  node-major activations for this batch tile
    l_ref: (N, N)            dot-dtype  shared graph Laplacian (constant block)
    w_ref: (K, Cin, Cout_p)  dot-dtype  per-order GraphConvolution weights, lane-padded
    o_ref: (Bt*N, Cout_p)    f32        batch-major, lane-dense output block
    """
    n = l_ref.shape[0]
    bt, cin = batch_tile, c_in
    f32 = jnp.float32
    dd = x_ref.dtype                       # MXU operand dtype (bf16 by default)

    l_mat = l_ref[...]                     # single (N, N) copy -- never broadcast over batch

    def to_batch_major(t_dd):
        # (N, Bt*Cin) node-major -> (Bt*N, Cin) batch-major via static lane slices
        # plus a sublane-axis concatenate (layout-safe; no lane-splitting reshape).
        if bt == 1:
            return t_dd
        return jnp.concatenate(
            [t_dd[:, b * cin:(b + 1) * cin] for b in range(bt)], axis=0)

    def order_matmul(t_dd, k):
        # (T_k @ x) @ W_k for the whole tile as ONE (Bt*N, Cin) @ (Cin, Cout_p) matmul.
        feats = to_batch_major(t_dd)
        return jnp.dot(feats, w_ref[k], preferred_element_type=f32)   # (Bt*N, Cout_p)

    # Chebyshev recursion carried on activations t_k = T_k @ x, node-major (N, Bt*Cin).
    # Each order is accumulated immediately; only t_prev / t_cur stay live.
    x_dd = x_ref[...]                                            # T_0 @ x (dot-dtype)
    acc = order_matmul(x_dd, 0)                                  # f32 accumulator
    t_prev = x_dd.astype(f32)
    if cheb_k > 1:
        t_cur = jnp.dot(l_mat, x_dd, preferred_element_type=f32)       # T_1 @ x
        t_cur_dd = t_cur.astype(dd)
        acc = acc + order_matmul(t_cur_dd, 1)
        for k in range(2, cheb_k):
            lt = jnp.dot(l_mat, t_cur_dd, preferred_element_type=f32)
            t_next = 2.0 * lt - t_prev                                  # f32 VPU math
            t_next_dd = t_next.astype(dd)
            acc = acc + order_matmul(t_next_dd, k)
            t_prev, t_cur, t_cur_dd = t_cur, t_next, t_next_dd

    # relu; bias=False.  Full unmasked 128-lane store, no reshape/transpose in-kernel.
    o_ref[...] = jnp.maximum(acc, 0.0).astype(o_ref.dtype)


def _vmem_footprint(bt, n, cin, cout_p, k, dot_bytes):
    """Rough per-grid-step VMEM footprint in bytes (double-buffered blocks + live values)."""
    x_blk = 2 * n * bt * cin * dot_bytes          # x block (double-buffered)
    o_blk = 2 * bt * n * cout_p * 4               # f32 output block (double-buffered)
    l_blk = 2 * n * n * dot_bytes                 # Laplacian (constant block)
    w_blk = 2 * k * cin * cout_p * dot_bytes      # weights (constant block)
    live = 6 * n * bt * cin * 4                   # t_prev/t_cur/lt + dot-dtype copies + batch-major temp
    acc = bt * n * cout_p * 4                     # f32 accumulator
    return x_blk + o_blk + l_blk + w_blk + live + acc


def _pick_batch_tile(batch, n, cin, cout_p, k, dot_bytes, budget=VMEM_BUDGET):
    """Pick Bt dividing `batch` that is layout-legal, fits VMEM, and prefers a
    lane-dense (Bt*Cin % 128 == 0) recursion state with a >=2-step (even) grid."""
    legal = []
    for bt in range(1, batch + 1):
        if batch % bt:
            continue
        x_ok = (bt * cin) % LANE == 0 or bt == batch      # x block lane constraint
        o_ok = (bt * n) % 8 == 0 or bt == batch           # output block sublane constraint
        if x_ok and o_ok:
            legal.append(bt)
    fitting = [bt for bt in legal
               if _vmem_footprint(bt, n, cin, cout_p, k, dot_bytes) <= budget]
    cands = fitting if fitting else [min(legal)]

    def score(bt):
        grid = batch // bt
        return (grid >= 2,                    # pipelining + v7x dual-TC sharding
                grid >= 2 and grid % 2 == 0,  # even grid load-balances v7x's 2 TCs
                bt)                           # then: biggest tile (amortize per-step cost)
    return max(cands, key=score)


def chebynet_forward(x, L, W, *, batch_tile=None, dot_dtype=jnp.bfloat16):
    """x: (B, N, Cin), L: (N, N), W: (K, Cin, Cout) -> (B, N, Cout) f32.

    dot_dtype: dtype of MXU matmul operands (bf16 default = native MXU rate on
    v5e/v6e/v7x); accumulation, recursion state and element-wise math stay f32.
    """
    B, N, Cin = x.shape
    K, _, Cout = W.shape
    cout_p = ((Cout + LANE - 1) // LANE) * LANE
    dot_bytes = jnp.dtype(dot_dtype).itemsize

    if batch_tile is None:
        batch_tile = _pick_batch_tile(B, N, Cin, cout_p, K, dot_bytes)
    bt = batch_tile
    assert B % bt == 0, "batch_tile must divide batch"
    assert (bt * Cin) % LANE == 0 or bt == B, "batch_tile*Cin must be a multiple of 128 (or bt == B)"
    assert (bt * N) % 8 == 0 or bt == B, "batch_tile*N must be a multiple of 8 (or bt == B)"

    # Node-major x (wrapper-side transpose): column index = b*Cin + c.  DMA'd in dot_dtype.
    x_nm = jnp.transpose(x, (1, 0, 2)).reshape(N, B * Cin).astype(dot_dtype)
    l_d = L.astype(dot_dtype)
    # Lane-pad Cout once; padded lanes stay zero (bias=False, relu(0)=0).
    w_p = jnp.pad(W, ((0, 0), (0, 0), (0, cout_p - Cout))).astype(dot_dtype)

    out_flat = pl.pallas_call(
        functools.partial(chebynet_kernel, cheb_k=K, batch_tile=bt, c_in=Cin),
        out_shape=jax.ShapeDtypeStruct((B * N, cout_p), jnp.float32),
        grid_spec=pltpu.PrefetchScalarGridSpec(
            num_scalar_prefetch=0,
            grid=(B // bt,),
            in_specs=[
                pl.BlockSpec((N, bt * Cin), lambda b: (0, b)),       # node-major x tile
                pl.BlockSpec((N, N), lambda b: (0, 0)),              # constant block: L
                pl.BlockSpec((K, Cin, cout_p), lambda b: (0, 0, 0)),  # constant block: W
            ],
            out_specs=pl.BlockSpec((bt * N, cout_p), lambda b: (b, 0)),
        ),
        compiler_params=pltpu.CompilerParams(
            dimension_semantics=("parallel",),
            vmem_limit_bytes=VMEM_LIMIT),
    )(x_nm, l_d, w_p)

    # Free reshape (row order is already batch-major: row = b*N + n) + one lane
    # un-pad slice.  If Cout is a multiple of 128 the slice is a no-op.
    return out_flat[:, :Cout].reshape(B, N, Cout)


def chebynet_reference(x, L, W):
    """Plain-JAX reference mirroring the PyTorch forward (explicit T_k matrices)."""
    K = W.shape[0]
    N = L.shape[-1]
    supports = []
    for k in range(K):
        if k == 0:
            supports.append(jnp.eye(N, dtype=jnp.float32))
        elif k == 1:
            supports.append(L)
        else:
            supports.append(2.0 * (L @ supports[-1]) - supports[-2])
    result = None
    for k in range(K):
        out = jnp.matmul(supports[k], x)              # (B, N, Cin) via broadcast
        out = jnp.matmul(out, W[k])                   # (B, N, Cout)
        result = out if result is None else result + out
    return jax.nn.relu(result)


def _make_inputs(key, B, N, Cin, Cout, K):
    kx, kl, kw = jax.random.split(key, 3)
    x = jax.random.normal(kx, (B, N, Cin), dtype=jnp.float32)
    A = jax.random.normal(kl, (N, N), dtype=jnp.float32)
    Lmat = (A + A.T) / (2.0 * jnp.sqrt(jnp.float32(N)))   # symmetric, roughly normalized
    xavier_std = (2.0 / (Cin + Cout)) ** 0.5              # xavier_normal_, bias=False
    W = jax.random.normal(kw, (K, Cin, Cout), dtype=jnp.float32) * xavier_std
    return x, Lmat, W


if __name__ == "__main__":
    key_small, key_tiled = jax.random.split(jax.random.PRNGKey(0))

    # -- small config consistent with the module (in=8, K=3, out=32, batch=2, 16 nodes).
    #    B*Cin < 128, so the heuristic collapses to a single full-batch tile.
    B, N, Cin, Cout, K = 2, 16, 8, 32, 3
    x, Lmat, W = _make_inputs(key_small, B, N, Cin, Cout, K)
    with jax.default_matmul_precision("highest"):
        ref = jax.block_until_ready(chebynet_reference(x, Lmat, W))

    out_f32 = jax.block_until_ready(
        chebynet_forward(x, Lmat, W, dot_dtype=jnp.float32))        # exact path
    assert out_f32.shape == (B, N, Cout)
    assert jnp.allclose(out_f32, ref, atol=1e-3, rtol=1e-3), "f32 kernel mismatch"

    out_bf16 = jax.block_until_ready(chebynet_forward(x, Lmat, W))  # default bf16 MXU operands
    assert out_bf16.shape == (B, N, Cout)
    assert jnp.allclose(out_bf16, ref, atol=1e-1, rtol=1e-1), "bf16 kernel mismatch"

    # -- tiled config: lane-dense batch tile (Bt*Cin = 128) and a 2-step parallel grid.
    B2, N2 = 32, 64
    x2, L2, W2 = _make_inputs(key_tiled, B2, N2, Cin, Cout, K)
    with jax.default_matmul_precision("highest"):
        ref2 = jax.block_until_ready(chebynet_reference(x2, L2, W2))
    out2 = jax.block_until_ready(chebynet_forward(x2, L2, W2))
    assert out2.shape == (B2, N2, Cout)
    assert jnp.allclose(out2, ref2, atol=1e-1, rtol=1e-1), "tiled bf16 kernel mismatch"

    print("KERNEL_OK")
</pallas_src>

<mosaic_0001>
module attributes {stable_mosaic.version = 11 : i64} {
  func.func @chebynet_kernel(%arg0: i32, %arg1: memref<16x16xf32, #tpu.memory_space<vmem>>, %arg2: memref<16x16xf32, #tpu.memory_space<vmem>>, %arg3: memref<3x8x128xf32, #tpu.memory_space<vmem>>, %arg4: memref<32x128xf32, #tpu.memory_space<vmem>>) attributes {dimension_semantics = [#tpu.dimension_semantics<parallel>], iteration_bounds = array<i64: 1>, scalar_prefetch = 0 : i64, scratch_operands = 0 : i64, tpu.core_type = #tpu.core_type<tc>, window_params = [{transform_indices = @transform_0, window_bounds = array<i64: 16, 16>}, {pipeline_mode = #tpu.pipeline_mode<synchronous>, transform_indices = @transform_1, window_bounds = array<i64: 16, 16>}, {pipeline_mode = #tpu.pipeline_mode<synchronous>, transform_indices = @transform_2, window_bounds = array<i64: 3, 8, 128>}, {transform_indices = @transform_3, window_bounds = array<i64: 32, 128>}]} {
    %c0 = arith.constant 0 : index
    %c0_0 = arith.constant 0 : index
    %0 = vector.load %arg2[%c0, %c0_0] : memref<16x16xf32, #tpu.memory_space<vmem>>, vector<16x16xf32>
    %c0_1 = arith.constant 0 : index
    %c0_2 = arith.constant 0 : index
    %1 = vector.load %arg1[%c0_1, %c0_2] : memref<16x16xf32, #tpu.memory_space<vmem>>, vector<16x16xf32>
    %2 = vector.extract_strided_slice %1 {offsets = [0, 0], sizes = [16, 8], strides = [1, 1]} : vector<16x16xf32> to vector<16x8xf32>
    %3 = vector.extract_strided_slice %1 {offsets = [0, 8], sizes = [16, 8], strides = [1, 1]} : vector<16x16xf32> to vector<16x8xf32>
    %4 = tpu.concatenate %2, %3 in 0 : vector<16x8xf32>, vector<16x8xf32> -> vector<32x8xf32>
    %c0_3 = arith.constant 0 : index
    %c0_4 = arith.constant 0 : index
    %c0_5 = arith.constant 0 : index
    %5 = vector.load %arg3[%c0_3, %c0_4, %c0_5] : memref<3x8x128xf32, #tpu.memory_space<vmem>>, vector<1x8x128xf32>
    %6 = vector.shape_cast %5 : vector<1x8x128xf32> to vector<8x128xf32>
    %cst = arith.constant dense<0.000000e+00> : vector<32x128xf32>
    %7 = tpu.matmul %4, %6, %cst {dimension_numbers = #tpu.dot_dimension_numbers<[1], [0], [0], [1], [0, 0, 1, 1], [], []>} : vector<32x8xf32>, vector<8x128xf32>, vector<32x128xf32> -> vector<32x128xf32>
    %cst_6 = arith.constant dense<0.000000e+00> : vector<16x16xf32>
    %8 = tpu.matmul %0, %1, %cst_6 {dimension_numbers = #tpu.dot_dimension_numbers<[1], [0], [0], [1], [0, 0, 1, 1], [], []>} : vector<16x16xf32>, vector<16x16xf32>, vector<16x16xf32> -> vector<16x16xf32>
    %9 = vector.extract_strided_slice %8 {offsets = [0, 0], sizes = [16, 8], strides = [1, 1]} : vector<16x16xf32> to vector<16x8xf32>
    %10 = vector.extract_strided_slice %8 {offsets = [0, 8], sizes = [16, 8], strides = [1, 1]} : vector<16x16xf32> to vector<16x8xf32>
    %11 = tpu.concatenate %9, %10 in 0 : vector<16x8xf32>, vector<16x8xf32> -> vector<32x8xf32>
    %c1 = arith.constant 1 : index
    %c0_7 = arith.constant 0 : index
    %c0_8 = arith.constant 0 : index
    %12 = vector.load %arg3[%c1, %c0_7, %c0_8] : memref<3x8x128xf32, #tpu.memory_space<vmem>>, vector<1x8x128xf32>
    %13 = vector.shape_cast %12 : vector<1x8x128xf32> to vector<8x128xf32>
    %cst_9 = arith.constant dense<0.000000e+00> : vector<32x128xf32>
    %14 = tpu.matmul %11, %13, %cst_9 {dimension_numbers = #tpu.dot_dimension_numbers<[1], [0], [0], [1], [0, 0, 1, 1], [], []>} : vector<32x8xf32>, vector<8x128xf32>, vector<32x128xf32> -> vector<32x128xf32>
    %15 = arith.addf %7, %14 : vector<32x128xf32>
    %cst_10 = arith.constant dense<0.000000e+00> : vector<16x16xf32>
    %16 = tpu.matmul %0, %8, %cst_10 {dimension_numbers = #tpu.dot_dimension_numbers<[1], [0], [0], [1], [0, 0, 1, 1], [], []>} : vector<16x16xf32>, vector<16x16xf32>, vector<16x16xf32> -> vector<16x16xf32>
    %cst_11 = arith.constant 2.000000e+00 : f32
    %17 = vector.broadcast %cst_11 : f32 to vector<16x16xf32>
    %18 = arith.mulf %17, %16 : vector<16x16xf32>
    %19 = arith.subf %18, %1 : vector<16x16xf32>
    %20 = vector.extract_strided_slice %19 {offsets = [0, 0], sizes = [16, 8], strides = [1, 1]} : vector<16x16xf32> to vector<16x8xf32>
    %21 = vector.extract_strided_slice %19 {offsets = [0, 8], sizes = [16, 8], strides = [1, 1]} : vector<16x16xf32> to vector<16x8xf32>
    %22 = tpu.concatenate %20, %21 in 0 : vector<16x8xf32>, vector<16x8xf32> -> vector<32x8xf32>
    %c2 = arith.constant 2 : index
    %c0_12 = arith.constant 0 : index
    %c0_13 = arith.constant 0 : index
    %23 = vector.load %arg3[%c2, %c0_12, %c0_13] : memref<3x8x128xf32, #tpu.memory_space<vmem>>, vector<1x8x128xf32>
    %24 = vector.shape_cast %23 : vector<1x8x128xf32> to vector<8x128xf32>
    %cst_14 = arith.constant dense<0.000000e+00> : vector<32x128xf32>
    %25 = tpu.matmul %22, %24, %cst_14 {dimension_numbers = #tpu.dot_dimension_numbers<[1], [0], [0], [1], [0, 0, 1, 1], [], []>} : vector<32x8xf32>, vector<8x128xf32>, vector<32x128xf32> -> vector<32x128xf32>
    %26 = arith.addf %15, %25 : vector<32x128xf32>
    %cst_15 = arith.constant 0.000000e+00 : f32
    %27 = vector.broadcast %cst_15 : f32 to vector<32x128xf32>
    %28 = arith.maximumf %26, %27 : vector<32x128xf32>
    %c0_16 = arith.constant 0 : index
    %c0_17 = arith.constant 0 : index
    %29 = vector.load %arg4[%c0_16, %c0_17] : memref<32x128xf32, #tpu.memory_space<vmem>>, vector<32x128xf32>
    tpu.vector_store %arg4[%c0_16, %c0_17], %28 {strides = array<i32>} : memref<32x128xf32, #tpu.memory_space<vmem>>, vector<32x128xf32>,
    return
  }
  func.func @transform_0(%arg0: i32) -> (i32, i32) {
    %c0_i32 = arith.constant 0 : i32
    %c0_i32_0 = arith.constant 0 : i32
    return %c0_i32, %arg0 : i32, i32
  }
  func.func @transform_1(%arg0: i32) -> (i32, i32) {
    %c0_i32 = arith.constant 0 : i32
    %c0_i32_0 = arith.constant 0 : i32
    %c0_i32_1 = arith.constant 0 : i32
    return %c0_i32, %c0_i32_0 : i32, i32
  }
  func.func @transform_2(%arg0: i32) -> (i32, i32, i32) {
    %c0_i32 = arith.constant 0 : i32
    %c0_i32_0 = arith.constant 0 : i32
    %c0_i32_1 = arith.constant 0 : i32
    %c0_i32_2 = arith.constant 0 : i32
    return %c0_i32, %c0_i32_0, %c0_i32_1 : i32, i32, i32
  }
  func.func @transform_3(%arg0: i32) -> (i32, i32) {
    %c0_i32 = arith.constant 0 : i32
    %c0_i32_0 = arith.constant 0 : i32
    return %arg0, %c0_i32 : i32, i32
  }
}

</mosaic_0001>

<llo_original>
// kernel: tpu_custom_call.1
$region0: #{tpu_custom_call.1}
  #allocation0 [shape = 'u32[]', space=smem, size = 0x4, offset = 0x4, fixed_abs, tag = 'smem constant byte address 0x4 - core index']
  #allocation1 [shape = 'u32[144,128]{1,0:T(1,128)}', space=vmem, size = 0x12000, scoped, tag = 'internal scratch']
  %s0 = inlined_call_operand.hbm [shape: f32[16,16], index: 0, kind: input, shape index: {}]
  %s1 = inlined_call_operand.hbm [shape: f32[16,16], index: 1, kind: input, shape index: {}]
  %s2 = inlined_call_operand.hbm [shape: f32[3,8,128], index: 2, kind: input, shape index: {}]
  %s3 = inlined_call_operand.hbm [shape: f32[32,128], index: 3, kind: output, shape index: {}]
  %s4 = sld [smem:[#allocation0]]
  $region34: #{tpu_custom_call.1} parent=0
    _
  %s6 = ssub.s32 1, %s4
  %s7 = scalar_select 0, %s6, %s4
  $region1: #{tpu_custom_call.1} parent=0
    #allocation2 [shape = 'u8[8192]{0}', space=vmem, size = 0x2000, scoped, tag = 'input window, operand 0, single buffered']
    #allocation3 [shape = 's32[1]{0}', space=sflag, size = 0x4, scoped, tag = 'scoped memory for tpu_custom_call.1']
    #allocation4 [shape = 's32[1]{0}', space=sflag, size = 0x4, scoped, tag = 'scoped memory for tpu_custom_call.1']
    #allocation5 [shape = 'u8[8192]{0}', space=vmem, size = 0x2000, scoped, tag = 'input window, operand 1, single buffered']
    #allocation6 [shape = 's32[1]{0}', space=sflag, size = 0x4, scoped, tag = 'scoped memory for tpu_custom_call.1']
    #allocation7 [shape = 'u8[12288]{0}', space=vmem, size = 0x3000, scoped, tag = 'input window, operand 2, single buffered']
    #allocation8 [shape = 'u8[16384]{0}', space=vmem, size = 0x4000, scoped, tag = 'output window, operand 0, single buffered']
    %8 = vsyncpa [#allocation3], 0
    %9 = vsyncpa [#allocation6], 0
    %10 = vsyncpa [#allocation4], 0
    // Predicated region
    $region2: #{tpu_custom_call.1} parent=1 // pred_check
      _
    $region3: #{tpu_custom_call.1} parent=1 // pred_check_branch
      %12 = sbr.rel (0) target = $region5
    $region4: #{tpu_custom_call.1} parent=1 // pred_region
      %s14 = ssub.s32 256, 256
      %15 = vsyncadd [#allocation3], %s14
      %s16 = sshll.u32 [#allocation2], 4
      %s17 = int_to_ptr.vmem [resolvable:$true] %s16
      %22 = dma.hbm_to_vmem [thread:$0]  %s0, 256, %s17, [#allocation3], 128, 128, 8
    $region5: #{tpu_custom_call.1} parent=1 // pred_fallthru
      _
    // Predicated region
    $region6: #{tpu_custom_call.1} parent=1 // pred_check
      _
    $region7: #{tpu_custom_call.1} parent=1 // pred_check_branch
      %24 = sbr.rel (0) target = $region9
    $region8: #{tpu_custom_call.1} parent=1 // pred_region
      %s26 = ssub.s32 256, 256
      %27 = vsyncadd [#allocation6], %s26
      %s28 = sshll.u32 [#allocation5], 4
      %s29 = int_to_ptr.vmem [resolvable:$true] %s28
      %34 = dma.hbm_to_vmem [thread:$0]  %s1, 256, %s29, [#allocation6], 128, 128, 8
    $region9: #{tpu_custom_call.1} parent=1 // pred_fallthru
      _
    // Predicated region
    $region10: #{tpu_custom_call.1} parent=1 // pred_check
      _
    $region11: #{tpu_custom_call.1} parent=1 // pred_check_branch
      %36 = sbr.rel (0) target = $region13
    $region12: #{tpu_custom_call.1} parent=1 // pred_region
      %s38 = ssub.s32 384, 384
      %39 = vsyncadd [#allocation6], %s38
      %s40 = sshll.u32 [#allocation7], 4
      %s41 = int_to_ptr.vmem [resolvable:$true] %s40
      %46 = dma.hbm_to_vmem [thread:$0]  %s2, 384, %s41, [#allocation6], 128, 128, 8
    $region13: #{tpu_custom_call.1} parent=1 // pred_fallthru
      _
    // Predicated region
    $region14: #{tpu_custom_call.1} parent=1 // pred_check
      _
    $region15: #{tpu_custom_call.1} parent=1 // pred_check_branch
      %48 = sbr.rel (0) target = $region17
    $region16: #{tpu_custom_call.1} parent=1 // pred_region
      %49 = dma.done [#allocation3], 256
    $region17: #{tpu_custom_call.1} parent=1 // pred_fallthru
      _
    // Predicated region
    $region18: #{tpu_custom_call.1} parent=1 // pred_check
      _
    $region19: #{tpu_custom_call.1} parent=1 // pred_check_branch
      %51 = sbr.rel (0) target = $region21
    $region20: #{tpu_custom_call.1} parent=1 // pred_region
      %52 = dma.done [#allocation6], 256
    $region21: #{tpu_custom_call.1} parent=1 // pred_fallthru
      _
    // Predicated region
    $region22: #{tpu_custom_call.1} parent=1 // pred_check
      _
    $region23: #{tpu_custom_call.1} parent=1 // pred_check_branch
      %54 = sbr.rel (0) target = $region25
    $region24: #{tpu_custom_call.1} parent=1 // pred_region
      %55 = dma.done [#allocation6], 384
    $region25: #{tpu_custom_call.1} parent=1 // pred_fallthru
      _
    %v56 = vld [vmem:[#allocation5] sm:$0xff]
    %v57 = vld [vmem:[#allocation5 + $0x8] sm:$0xff]
    %v58 = vld [vmem:[#allocation2] sm:$0xff]
    %v59 = vld [vmem:[#allocation2 + $0x8] sm:$0xff]
    %62 = vrot.lane.b32.xlu0 %v58, 120
    %v63 = vpop.permute.xlu0 %62
    %64 = vrot.lane.b32.xlu0 %v59, 120
    %v65 = vpop.permute.xlu0 %64
    %v66 = vld [vmem:[#allocation7] sm:$0xff]
    %vm67 = vcmask 130048
    %v69 = vsel %vm67, %v56, 0
    %v72 = vsel %vm67, %v57, 0
    %74 = vmatprep.subr.mxu0 0.0
    %75 = vmatpush1.msra.mxu0 %v58
    %76 = vmatprep.subr.mxu0 0.0
    %77 = vmatpush1.msra.mxu0 %v59
    %78 = vmatprep.subr.mxu0 0.0
    %79 = vmatpush1.msra.mxu0 0.0
    %80 = vmatprep.subr.mxu0 0.0
    %81 = vmatpush1.msra.mxu0 0.0
    %82 = vmatprep.subr.mxu0 0.0
    %83 = vmatpush1.msra.mxu0 0.0
    %84 = vmatprep.subr.mxu0 0.0
    %85 = vmatpush1.msra.mxu0 0.0
    %86 = vmatprep.subr.mxu0 0.0
    %87 = vmatpush1.msra.mxu0 0.0
    %88 = vmatprep.subr.mxu0 0.0
    %89 = vmatpush1.msra.mxu0 0.0
    %90 = vmatprep.subr.mxu0 0.0
    %91 = vmatpush1.msra.mxu0 0.0
    %92 = vmatprep.subr.mxu0 0.0
    %93 = vmatpush1.msra.mxu0 0.0
    %94 = vmatprep.subr.mxu0 0.0
    %95 = vmatpush1.msra.mxu0 0.0
    %96 = vmatprep.subr.mxu0 0.0
    %97 = vmatpush1.msra.mxu0 0.0
    %98 = vmatprep.subr.mxu0 0.0
    %99 = vmatpush1.msra.mxu0 0.0
    %100 = vmatprep.subr.mxu0 0.0
    %101 = vmatpush1.msra.mxu0 0.0
    %102 = vmatprep.subr.mxu0 0.0
    %103 = vmatpush1.msra.mxu0 0.0
    %104 = vmatprep.subr.mxu0 0.0
    %105 = vmatpush1.msra.mxu0 0.0
    %106 = vmatprep.subr.mxu0 0.0
    %107 = vmatpush1.msra.mxu0 0.0
    %108 = vmatprep.subr.mxu0 0.0
    %109 = vmatpush1.msra.mxu0 0.0
    %110 = vmatprep.subr.mxu0 0.0
    %111 = vmatpush1.msra.mxu0 0.0
    %112 = vmatprep.subr.mxu0 0.0
    %113 = vmatpush1.msra.mxu0 0.0
    %114 = vmatprep.subr.mxu0 0.0
    %115 = vmatpush1.msra.mxu0 0.0
    %116 = vmatprep.subr.mxu0 0.0
    %117 = vmatpush1.msra.mxu0 0.0
    %118 = vmatprep.subr.mxu0 0.0
    %119 = vmatpush1.msra.mxu0 0.0
    %120 = vmatprep.subr.mxu0 0.0
    %121 = vmatpush1.msra.mxu0 0.0
    %122 = vmatprep.subr.mxu0 0.0
    %123 = vmatpush1.msra.mxu0 0.0
    %124 = vmatprep.subr.mxu0 0.0
    %125 = vmatpush1.msra.mxu0 0.0
    %126 = vmatprep.subr.mxu0 0.0
    %127 = vmatpush1.msra.mxu0 0.0
    %128 = vmatprep.subr.mxu0 0.0
    %129 = vmatpush1.msra.mxu0 0.0
    %130 = vmatprep.subr.mxu0 0.0
    %131 = vmatpush1.msra.mxu0 0.0
    %132 = vmatprep.subr.mxu0 0.0
    %133 = vmatpush1.msra.mxu0 0.0
    %134 = vmatprep.subr.mxu0 0.0
    %135 = vmatpush1.msra.mxu0 0.0
    %136 = vmatprep.subr.mxu0 0.0
    %137 = vmatpush1.msra.mxu0 0.0
    %138 = vmatprep.mubr.f32.mxu0 0.0
    %139 = vmatmul.mubr.f32.gmra.mrb[0].mxu0 %v69
    %v140 = vpop.f32.mrb[0].mxu0
    %v141 = vadd.f32 0.0, %v140
    %v142 = vpop.f32.mrb[0].mxu0
    %143 = vmatprep.mubr.f32.mxu0 0.0
    %144 = vmatmul.mubr.f32.gmra.mrb[0].mxu0 %v72
    %v145 = vpop.f32.mrb[0].mxu0
    %v146 = vadd.f32 0.0, %v145
    %v147 = vpop.f32.mrb[0].mxu0
    %148 = vdwg.mxu0
    %151 = vrot.lane.b32.xlu0 %v141, 120
    %v152 = vpop.permute.xlu0 %151
    %153 = vrot.lane.b32.xlu0 %v146, 120
    %v154 = vpop.permute.xlu0 %153
    %s155 = scalar_lea.vmem [#allocation7], 8
    %v156 = vld [vmem:[%s155] sm:$0xff]
    %vm157 = vcmask 64512
    %v158 = vsel %vm157, %v141, 0
    %v160 = vsel %vm157, %v146, 0
    %v162 = vsel %vm157, %v152, 0
    %v164 = vsel %vm157, %v154, 0
    %166 = vmatprep.subr.mxu0 0.0
    %167 = vmatpush1.msra.mxu0 %v156
    %168 = vmatprep.subr.mxu0 0.0
    %169 = vmatpush1.msra.mxu0 0.0
    %170 = vmatprep.subr.mxu0 0.0
    %171 = vmatpush1.msra.mxu0 0.0
    %172 = vmatprep.subr.mxu0 0.0
    %173 = vmatpush1.msra.mxu0 0.0
    %174 = vmatprep.subr.mxu0 0.0
    %175 = vmatpush1.msra.mxu0 0.0
    %176 = vmatprep.subr.mxu0 0.0
    %177 = vmatpush1.msra.mxu0 0.0
    %178 = vmatprep.subr.mxu0 0.0
    %179 = vmatpush1.msra.mxu0 0.0
    %180 = vmatprep.subr.mxu0 0.0
    %181 = vmatpush1.msra.mxu0 0.0
    %182 = vmatprep.subr.mxu0 0.0
    %183 = vmatpush1.msra.mxu0 0.0
    %184 = vmatprep.subr.mxu0 0.0
    %185 = vmatpush1.msra.mxu0 0.0
    %186 = vmatprep.subr.mxu0 0.0
    %187 = vmatpush1.msra.mxu0 0.0
    %188 = vmatprep.subr.mxu0 0.0
    %189 = vmatpush1.msra.mxu0 0.0
    %190 = vmatprep.subr.mxu0 0.0
    %191 = vmatpush1.msra.mxu0 0.0
    %192 = vmatprep.subr.mxu0 0.0
    %193 = vmatpush1.msra.mxu0 0.0
    %194 = vmatprep.subr.mxu0 0.0
    %195 = vmatpush1.msra.mxu0 0.0
    %196 = vmatprep.subr.mxu0 0.0
    %197 = vmatpush1.msra.mxu0 0.0
    %198 = vmatprep.subr.mxu0 0.0
    %199 = vmatpush1.msra.mxu0 0.0
    %200 = vmatprep.subr.mxu0 0.0
    %201 = vmatpush1.msra.mxu0 0.0
    %202 = vmatprep.subr.mxu0 0.0
    %203 = vmatpush1.msra.mxu0 0.0
    %204 = vmatprep.subr.mxu0 0.0
    %205 = vmatpush1.msra.mxu0 0.0
    %206 = vmatprep.subr.mxu0 0.0
    %207 = vmatpush1.msra.mxu0 0.0
    %208 = vmatprep.subr.mxu0 0.0
    %209 = vmatpush1.msra.mxu0 0.0
    %210 = vmatprep.subr.mxu0 0.0
    %211 = vmatpush1.msra.mxu0 0.0
    %212 = vmatprep.subr.mxu0 0.0
    %213 = vmatpush1.msra.mxu0 0.0
    %214 = vmatprep.subr.mxu0 0.0
    %215 = vmatpush1.msra.mxu0 0.0
    %216 = vmatprep.subr.mxu0 0.0
    %217 = vmatpush1.msra.mxu0 0.0
    %218 = vmatprep.subr.mxu0 0.0
    %219 = vmatpush1.msra.mxu0 0.0
    %220 = vmatprep.subr.mxu0 0.0
    %221 = vmatpush1.msra.mxu0 0.0
    %222 = vmatprep.subr.mxu0 0.0
    %223 = vmatpush1.msra.mxu0 0.0
    %224 = vmatprep.subr.mxu0 0.0
    %225 = vmatpush1.msra.mxu0 0.0
    %226 = vmatprep.subr.mxu0 0.0
    %227 = vmatpush1.msra.mxu0 0.0
    %228 = vmatprep.subr.mxu0 0.0
    %229 = vmatpush1.msra.mxu0 0.0
    %230 = vmatprep.mubr.f32.mxu0 0.0
    %231 = vmatmul.mubr.f32.gmra.mrb[0].mxu0 %v158
    %v232 = vpop.f32.mrb[0].mxu0
    %v233 = vadd.f32 0.0, %v232
    %v234 = vpop.f32.mrb[0].mxu0
    %235 = vmatprep.mubr.f32.mxu0 0.0
    %236 = vmatmul.mubr.f32.gmra.mrb[0].mxu0 %v160
    %v237 = vpop.f32.mrb[0].mxu0
    %v238 = vadd.f32 0.0, %v237
    %v239 = vpop.f32.mrb[0].mxu0
    %240 = vmatprep.mubr.f32.mxu0 0.0
    %241 = vmatmul.mubr.f32.gmra.mrb[0].mxu0 %v162
    %v242 = vpop.f32.mrb[0].mxu0
    %v243 = vadd.f32 0.0, %v242
    %v244 = vpop.f32.mrb[0].mxu0
    %245 = vmatprep.mubr.f32.mxu0 0.0
    %246 = vmatmul.mubr.f32.gmra.mrb[0].mxu0 %v164
    %v247 = vpop.f32.mrb[0].mxu0
    %v248 = vadd.f32 0.0, %v247
    %v249 = vpop.f32.mrb[0].mxu0
    %250 = vdwg.mxu0
    %v251 = vsel %vm157, %v58, 0
    %v253 = vsel %vm157, %v59, 0
    %v255 = vsel %vm157, %v63, 0
    %v257 = vsel %vm157, %v65, 0
    %259 = vmatprep.subr.mxu0 0.0
    %260 = vmatpush1.msra.mxu0 %v66
    %261 = vmatprep.subr.mxu0 0.0
    %262 = vmatpush1.msra.mxu0 0.0
    %263 = vmatprep.subr.mxu0 0.0
    %264 = vmatpush1.msra.mxu0 0.0
    %265 = vmatprep.subr.mxu0 0.0
    %266 = vmatpush1.msra.mxu0 0.0
    %267 = vmatprep.subr.mxu0 0.0
    %268 = vmatpush1.msra.mxu0 0.0
    %269 = vmatprep.subr.mxu0 0.0
    %270 = vmatpush1.msra.mxu0 0.0
    %271 = vmatprep.subr.mxu0 0.0
    %272 = vmatpush1.msra.mxu0 0.0
    %273 = vmatprep.subr.mxu0 0.0
    %274 = vmatpush1.msra.mxu0 0.0
    %275 = vmatprep.subr.mxu0 0.0
    %276 = vmatpush1.msra.mxu0 0.0
    %277 = vmatprep.subr.mxu0 0.0
    %278 = vmatpush1.msra.mxu0 0.0
    %279 = vmatprep.subr.mxu0 0.0
    %280 = vmatpush1.msra.mxu0 0.0
    %281 = vmatprep.subr.mxu0 0.0
    %282 = vmatpush1.msra.mxu0 0.0
    %283 = vmatprep.subr.mxu0 0.0
    %284 = vmatpush1.msra.mxu0 0.0
    %285 = vmatprep.subr.mxu0 0.0
    %286 = vmatpush1.msra.mxu0 0.0
    %287 = vmatprep.subr.mxu0 0.0
    %288 = vmatpush1.msra.mxu0 0.0
    %289 = vmatprep.subr.mxu0 0.0
    %290 = vmatpush1.msra.mxu0 0.0
    %291 = vmatprep.subr.mxu0 0.0
    %292 = vmatpush1.msra.mxu0 0.0
    %293 = vmatprep.subr.mxu0 0.0
    %294 = vmatpush1.msra.mxu0 0.0
    %295 = vmatprep.subr.mxu0 0.0
    %296 = vmatpush1.msra.mxu0 0.0
    %297 = vmatprep.subr.mxu0 0.0
    %298 = vmatpush1.msra.mxu0 0.0
    %299 = vmatprep.subr.mxu0 0.0
    %300 = vmatpush1.msra.mxu0 0.0
    %301 = vmatprep.subr.mxu0 0.0
    %302 = vmatpush1.msra.mxu0 0.0
    %303 = vmatprep.subr.mxu0 0.0
    %304 = vmatpush1.msra.mxu0 0.0
    %305 = vmatprep.subr.mxu0 0.0
    %306 = vmatpush1.msra.mxu0 0.0
    %307 = vmatprep.subr.mxu0 0.0
    %308 = vmatpush1.msra.mxu0 0.0
    %309 = vmatprep.subr.mxu0 0.0
    %310 = vmatpush1.msra.mxu0 0.0
    %311 = vmatprep.subr.mxu0 0.0
    %312 = vmatpush1.msra.mxu0 0.0
    %313 = vmatprep.subr.mxu0 0.0
    %314 = vmatpush1.msra.mxu0 0.0
    %315 = vmatprep.subr.mxu0 0.0
    %316 = vmatpush1.msra.mxu0 0.0
    %317 = vmatprep.subr.mxu0 0.0
    %318 = vmatpush1.msra.mxu0 0.0
    %319 = vmatprep.subr.mxu0 0.0
    %320 = vmatpush1.msra.mxu0 0.0
    %321 = vmatprep.subr.mxu0 0.0
    %322 = vmatpush1.msra.mxu0 0.0
    %323 = vmatprep.mubr.f32.mxu0 0.0
    %324 = vmatmul.mubr.f32.gmra.mrb[0].mxu0 %v251
    %v325 = vpop.f32.mrb[0].mxu0
    %v326 = vadd.f32 %v233, %v325
    %v327 = vpop.f32.mrb[0].mxu0
    %328 = vmatprep.mubr.f32.mxu0 0.0
    %329 = vmatmul.mubr.f32.gmra.mrb[0].mxu0 %v253
    %v330 = vpop.f32.mrb[0].mxu0
    %v331 = vadd.f32 %v238, %v330
    %v332 = vpop.f32.mrb[0].mxu0
    %333 = vmatprep.mubr.f32.mxu0 0.0
    %334 = vmatmul.mubr.f32.gmra.mrb[0].mxu0 %v255
    %v335 = vpop.f32.mrb[0].mxu0
    %v336 = vadd.f32 %v243, %v335
    %v337 = vpop.f32.mrb[0].mxu0
    %338 = vmatprep.mubr.f32.mxu0 0.0
    %339 = vmatmul.mubr.f32.gmra.mrb[0].mxu0 %v257
    %v340 = vpop.f32.mrb[0].mxu0
    %v341 = vadd.f32 %v248, %v340
    %v342 = vpop.f32.mrb[0].mxu0
    %343 = vdwg.mxu0
    %344 = vmatprep.subr.mxu0 0.0
    %345 = vmatpush1.msra.mxu0 %v141
    %346 = vmatprep.subr.mxu0 0.0
    %347 = vmatpush1.msra.mxu0 %v146
    %348 = vmatprep.subr.mxu0 0.0
    %349 = vmatpush1.msra.mxu0 0.0
    %350 = vmatprep.subr.mxu0 0.0
    %351 = vmatpush1.msra.mxu0 0.0
    %352 = vmatprep.subr.mxu0 0.0
    %353 = vmatpush1.msra.mxu0 0.0
    %354 = vmatprep.subr.mxu0 0.0
    %355 = vmatpush1.msra.mxu0 0.0
    %356 = vmatprep.subr.mxu0 0.0
    %357 = vmatpush1.msra.mxu0 0.0
    %358 = vmatprep.subr.mxu0 0.0
    %359 = vmatpush1.msra.mxu0 0.0
    %360 = vmatprep.subr.mxu0 0.0
    %361 = vmatpush1.msra.mxu0 0.0
    %362 = vmatprep.subr.mxu0 0.0
    %363 = vmatpush1.msra.mxu0 0.0
    %364 = vmatprep.subr.mxu0 0.0
    %365 = vmatpush1.msra.mxu0 0.0
    %366 = vmatprep.subr.mxu0 0.0
    %367 = vmatpush1.msra.mxu0 0.0
    %368 = vmatprep.subr.mxu0 0.0
    %369 = vmatpush1.msra.mxu0 0.0
    %370 = vmatprep.subr.mxu0 0.0
    %371 = vmatpush1.msra.mxu0 0.0
    %372 = vmatprep.subr.mxu0 0.0
    %373 = vmatpush1.msra.mxu0 0.0
    %374 = vmatprep.subr.mxu0 0.0
    %375 = vmatpush1.msra.mxu0 0.0
    %376 = vmatprep.subr.mxu0 0.0
    %377 = vmatpush1.msra.mxu0 0.0
    %378 = vmatprep.subr.mxu0 0.0
    %379 = vmatpush1.msra.mxu0 0.0
    %380 = vmatprep.subr.mxu0 0.0
    %381 = vmatpush1.msra.mxu0 0.0
    %382 = vmatprep.subr.mxu0 0.0
    %383 = vmatpush1.msra.mxu0 0.0
    %384 = vmatprep.subr.mxu0 0.0
    %385 = vmatpush1.msra.mxu0 0.0
    %386 = vmatprep.subr.mxu0 0.0
    %387 = vmatpush1.msra.mxu0 0.0
    %388 = vmatprep.subr.mxu0 0.0
    %389 = vmatpush1.msra.mxu0 0.0
    %390 = vmatprep.subr.mxu0 0.0
    %391 = vmatpush1.msra.mxu0 0.0
    %392 = vmatprep.subr.mxu0 0.0
    %393 = vmatpush1.msra.mxu0 0.0
    %394 = vmatprep.subr.mxu0 0.0
    %395 = vmatpush1.msra.mxu0 0.0
    %396 = vmatprep.subr.mxu0 0.0
    %397 = vmatpush1.msra.mxu0 0.0
    %398 = vmatprep.subr.mxu0 0.0
    %399 = vmatpush1.msra.mxu0 0.0
    %400 = vmatprep.subr.mxu0 0.0
    %401 = vmatpush1.msra.mxu0 0.0
    %402 = vmatprep.subr.mxu0 0.0
    %403 = vmatpush1.msra.mxu0 0.0
    %404 = vmatprep.subr.mxu0 0.0
    %405 = vmatpush1.msra.mxu0 0.0
    %406 = vmatprep.subr.mxu0 0.0
    %407 = vmatpush1.msra.mxu0 0.0
    %408 = vmatprep.mubr.f32.mxu0 0.0
    %409 = vmatmul.mubr.f32.gmra.mrb[0].mxu0 %v69
    %v410 = vpop.f32.mrb[0].mxu0
    %v411 = vadd.f32 0.0, %v410
    %v412 = vpop.f32.mrb[0].mxu0
    %413 = vmatprep.mubr.f32.mxu0 0.0
    %414 = vmatmul.mubr.f32.gmra.mrb[0].mxu0 %v72
    %v415 = vpop.f32.mrb[0].mxu0
    %v416 = vadd.f32 0.0, %v415
    %v417 = vpop.f32.mrb[0].mxu0
    %418 = vdwg.mxu0
    %v419 = vmul.f32 %v411, 2.0
    %v420 = vmul.f32 %v416, 2.0
    %v421 = vsub.f32 %v419, %v58
    %v422 = vsub.f32 %v420, %v59
    %425 = vrot.lane.b32.xlu0 %v421, 120
    %v426 = vpop.permute.xlu0 %425
    %427 = vrot.lane.b32.xlu0 %v422, 120
    %v428 = vpop.permute.xlu0 %427
    %s429 = scalar_lea.vmem [#allocation7], 16
    %v430 = vld [vmem:[%s429] sm:$0xff]
    %v431 = vsel %vm157, %v421, 0
    %v433 = vsel %vm157, %v422, 0
    %v435 = vsel %vm157, %v426, 0
    %v437 = vsel %vm157, %v428, 0
    %439 = vmatprep.subr.mxu0 0.0
    %440 = vmatpush1.msra.mxu0 %v430
    %441 = vmatprep.subr.mxu0 0.0
    %442 = vmatpush1.msra.mxu0 0.0
    %443 = vmatprep.subr.mxu0 0.0
    %444 = vmatpush1.msra.mxu0 0.0
    %445 = vmatprep.subr.mxu0 0.0
    %446 = vmatpush1.msra.mxu0 0.0
    %447 = vmatprep.subr.mxu0 0.0
    %448 = vmatpush1.msra.mxu0 0.0
    %449 = vmatprep.subr.mxu0 0.0
    %450 = vmatpush1.msra.mxu0 0.0
    %451 = vmatprep.subr.mxu0 0.0
    %452 = vmatpush1.msra.mxu0 0.0
    %453 = vmatprep.subr.mxu0 0.0
    %454 = vmatpush1.msra.mxu0 0.0
    %455 = vmatprep.subr.mxu0 0.0
    %456 = vmatpush1.msra.mxu0 0.0
    %457 = vmatprep.subr.mxu0 0.0
    %458 = vmatpush1.msra.mxu0 0.0
    %459 = vmatprep.subr.mxu0 0.0
    %460 = vmatpush1.msra.mxu0 0.0
    %461 = vmatprep.subr.mxu0 0.0
    %462 = vmatpush1.msra.mxu0 0.0
    %463 = vmatprep.subr.mxu0 0.0
    %464 = vmatpush1.msra.mxu0 0.0
    %465 = vmatprep.subr.mxu0 0.0
    %466 = vmatpush1.msra.mxu0 0.0
    %467 = vmatprep.subr.mxu0 0.0
    %468 = vmatpush1.msra.mxu0 0.0
    %469 = vmatprep.subr.mxu0 0.0
    %470 = vmatpush1.msra.mxu0 0.0
    %471 = vmatprep.subr.mxu0 0.0
    %472 = vmatpush1.msra.mxu0 0.0
    %473 = vmatprep.subr.mxu0 0.0
    %474 = vmatpush1.msra.mxu0 0.0
    %475 = vmatprep.subr.mxu0 0.0
    %476 = vmatpush1.msra.mxu0 0.0
    %477 = vmatprep.subr.mxu0 0.0
    %478 = vmatpush1.msra.mxu0 0.0
    %479 = vmatprep.subr.mxu0 0.0
    %480 = vmatpush1.msra.mxu0 0.0
    %481 = vmatprep.subr.mxu0 0.0
    %482 = vmatpush1.msra.mxu0 0.0
    %483 = vmatprep.subr.mxu0 0.0
    %484 = vmatpush1.msra.mxu0 0.0
    %485 = vmatprep.subr.mxu0 0.0
    %486 = vmatpush1.msra.mxu0 0.0
    %487 = vmatprep.subr.mxu0 0.0
    %488 = vmatpush1.msra.mxu0 0.0
    %489 = vmatprep.subr.mxu0 0.0
    %490 = vmatpush1.msra.mxu0 0.0
    %491 = vmatprep.subr.mxu0 0.0
    %492 = vmatpush1.msra.mxu0 0.0
    %493 = vmatprep.subr.mxu0 0.0
    %494 = vmatpush1.msra.mxu0 0.0
    %495 = vmatprep.subr.mxu0 0.0
    %496 = vmatpush1.msra.mxu0 0.0
    %497 = vmatprep.subr.mxu0 0.0
    %498 = vmatpush1.msra.mxu0 0.0
    %499 = vmatprep.subr.mxu0 0.0
    %500 = vmatpush1.msra.mxu0 0.0
    %501 = vmatprep.subr.mxu0 0.0
    %502 = vmatpush1.msra.mxu0 0.0
    %503 = vmatprep.mubr.f32.mxu0 0.0
    %504 = vmatmul.mubr.f32.gmra.mrb[0].mxu0 %v431
    %v505 = vpop.f32.mrb[0].mxu0
    %v506 = vadd.f32 0.0, %v505
    %v507 = vpop.f32.mrb[0].mxu0
    %508 = vmatprep.mubr.f32.mxu0 0.0
    %509 = vmatmul.mubr.f32.gmra.mrb[0].mxu0 %v433
    %v510 = vpop.f32.mrb[0].mxu0
    %v511 = vadd.f32 0.0, %v510
    %v512 = vpop.f32.mrb[0].mxu0
    %513 = vmatprep.mubr.f32.mxu0 0.0
    %514 = vmatmul.mubr.f32.gmra.mrb[0].mxu0 %v435
    %v515 = vpop.f32.mrb[0].mxu0
    %v516 = vadd.f32 0.0, %v515
    %v517 = vpop.f32.mrb[0].mxu0
    %518 = vmatprep.mubr.f32.mxu0 0.0
    %519 = vmatmul.mubr.f32.gmra.mrb[0].mxu0 %v437
    %v520 = vpop.f32.mrb[0].mxu0
    %v521 = vadd.f32 0.0, %v520
    %v522 = vpop.f32.mrb[0].mxu0
    %523 = vdwg.mxu0
    %v524 = vadd.f32 %v326, %v506
    %v525 = vadd.f32 %v331, %v511
    %v526 = vadd.f32 %v336, %v516
    %v527 = vadd.f32 %v341, %v521
    %v528 = vmax.f32 %v524, 0.0
    %v529 = vmax.f32 %v525, 0.0
    %v530 = vmax.f32 %v526, 0.0
    %v531 = vmax.f32 %v527, 0.0
    %532 = vst [vmem:[#allocation8] sm:$0xff] %v528
    %533 = vst [vmem:[#allocation8 + $0x8] sm:$0xff] %v529
    %534 = vst [vmem:[#allocation8 + $0x10] sm:$0xff] %v530
    %535 = vst [vmem:[#allocation8 + $0x18] sm:$0xff] %v531
    // Predicated region
    $region26: #{tpu_custom_call.1} parent=1 // pred_check
      _
    $region27: #{tpu_custom_call.1} parent=1 // pred_check_branch
      %537 = sbr.rel (0) target = $region29
    $region28: #{tpu_custom_call.1} parent=1 // pred_region
      %s539 = ssub.s32 512, 512
      %540 = vsyncadd [#allocation4], %s539
      %s541 = sshll.u32 [#allocation8], 4
      %s542 = int_to_ptr.vmem [resolvable:$true] %s541
      %547 = dma.vmem_to_hbm [thread:$0]  %s542, 512, %s3, [#allocation4], 128, 128, 8
    $region29: #{tpu_custom_call.1} parent=1 // pred_fallthru
      _
    // Predicated region
    $region30: #{tpu_custom_call.1} parent=1 // pred_check
      _
    $region31: #{tpu_custom_call.1} parent=1 // pred_check_branch
      %549 = sbr.rel (0) target = $region33
    $region32: #{tpu_custom_call.1} parent=1 // pred_region
      %550 = dma.done [#allocation4], 512
    $region33: #{tpu_custom_call.1} parent=1 // pred_fallthru
      _
    %551 = vsyncpa [#allocation3], 1
    %552 = vsyncpa [#allocation6], 1
    %553 = vsyncpa [#allocation4], 1

</llo_original>
